<compile_context>
chip_gen: v7x
topology: tpu7x:2x2x1
jax: 0.10.0
libtpu: 0.0.40
codegen_flags: <defaults>
</compile_context>

<pallas_src>
import math

import jax
import jax.numpy as jnp
from jax.experimental import pallas as pl
from jax.experimental.pallas import tpu as pltpu


def _round_up(x, m):
    return ((x + m - 1) // m) * m


def _pnn_kernel(seq_ref, mask_ref, user_ref, item_ref,
                w1u_ref, w1i_ref, w1m_ref, w1x_ref, b1_ref,
                w2_ref, b2_ref, w3_ref, b3_ref,
                score_ref, mean_ref):
    # seq_ref:  (TB, S, Di)  behavior-sequence embeddings for TB batch rows
    # mask_ref: (TB, S, 1)   binary mask (from adgroup_id_seq != 0)
    # user_ref: (TB, Du)     user_emb tile
    # item_ref: (TB, Di)     item_emb tile
    # w1*_ref:  first prediction Linear, W.T split over the concat blocks
    # w2/w3:    remaining prediction Linears (W.T); b*: biases as (1, H)
    # score_ref: (TB, 1)     sigmoid(logits)
    # mean_ref:  (TB, Di)    mean-pooled sequence embedding (module eval output)
    seq = seq_ref[...]
    m = mask_ref[...]

    # Masked mean pooling: VPU multiply + sublane (axis=1) reduction on the XLU,
    # divide via the EUP approx reciprocal (frees the MXU / vst slots).
    summed = jnp.sum(seq * m, axis=1)                       # (TB, Di)
    length = jnp.sum(m, axis=1)                             # (TB, 1)
    denom = jnp.maximum(length, jnp.float32(1.0))
    mean_emb = summed * pl.reciprocal(denom, approx=True)   # (TB, Di)

    user = user_ref[...]                                    # (TB, Du)
    item = item_ref[...]                                    # (TB, Di)
    cross = item * mean_emb                                 # (TB, Di)

    # First prediction layer, decomposed over the feature-concat blocks
    # (cat([user, item, mean, item*mean]) @ W1  ==  sum of four block matmuls).
    h = jnp.dot(user, w1u_ref[...], preferred_element_type=jnp.float32)
    h = h + jnp.dot(item, w1i_ref[...], preferred_element_type=jnp.float32)
    h = h + jnp.dot(mean_emb, w1m_ref[...], preferred_element_type=jnp.float32)
    h = h + jnp.dot(cross, w1x_ref[...], preferred_element_type=jnp.float32)
    h = jnp.maximum(h + b1_ref[...], 0.0)                   # ReLU

    h2 = jnp.dot(h, w2_ref[...], preferred_element_type=jnp.float32) + b2_ref[...]
    h2 = jnp.maximum(h2, 0.0)                               # ReLU

    logits = jnp.dot(h2, w3_ref[...], preferred_element_type=jnp.float32) + b3_ref[...]
    score = 1.0 / (1.0 + jnp.exp(-logits))                  # sigmoid (EUP exp)

    score_ref[...] = score.astype(score_ref.dtype)
    mean_ref[...] = mean_emb.astype(mean_ref.dtype)


def pnn_forward_pallas(user_emb, item_emb, seq_emb, seq_mask, params, *, tb=None):
    """
    user_emb: (B, Du) f32
    item_emb: (B, Di) f32
    seq_emb:  (B, S, Di) f32
    seq_mask: (B, S) f32 (binary, from adgroup_id_seq != 0)
    params:   dict with w1 (Du+3*Di, H1), b1 (H1,), w2 (H1, H2), b2 (H2,),
              w3 (H2, 1), b3 (1,)   -- Linear weights already transposed.
    returns:  (score (B, 1), mean_emb (B, Di))
    """
    B, S, Di = seq_emb.shape
    Du = user_emb.shape[1]
    H1 = params["w1"].shape[1]
    H2 = params["w2"].shape[1]

    # Batch rows per grid step: multiple of 8 (sublane), capped so the
    # double-buffered working set stays well under the smallest scoped VMEM
    # (v5e default 16 MiB, v7x physical 64 MiB).  For large B this gives
    # >= 2 grid tiles so v7x's two TensorCores both get work.
    if tb is None:
        per_row_bytes = 4 * (S * Di + S + Du + 2 * Di + 1)
        tb_cap = max(8, (4 * 1024 * 1024) // max(per_row_bytes, 1))
        tb = min(512, tb_cap, _round_up(B, 8))
        tb = _round_up(tb, 8)
    B_pad = _round_up(B, tb)
    if B_pad != B:
        pad = B_pad - B
        user_emb = jnp.pad(user_emb, ((0, pad), (0, 0)))
        item_emb = jnp.pad(item_emb, ((0, pad), (0, 0)))
        seq_emb = jnp.pad(seq_emb, ((0, pad), (0, 0), (0, 0)))
        seq_mask = jnp.pad(seq_mask, ((0, pad), (0, 0)))   # zero mask -> mean 0

    mask3 = seq_mask[:, :, None]                            # (B_pad, S, 1)

    # Split the first Linear's weight over the four concat blocks.
    w1 = params["w1"]
    w1u = w1[:Du]
    w1i = w1[Du:Du + Di]
    w1m = w1[Du + Di:Du + 2 * Di]
    w1x = w1[Du + 2 * Di:]
    b1 = params["b1"].reshape(1, H1)
    w2 = params["w2"]
    b2 = params["b2"].reshape(1, H2)
    w3 = params["w3"]
    b3 = params["b3"].reshape(1, 1)

    nb = B_pad // tb
    flops = int(2 * B_pad * ((Du + 3 * Di) * H1 + H1 * H2 + H2)
                + 3 * B_pad * S * Di)
    bytes_accessed = int(4 * (B_pad * (S * Di + S + Du + 2 * Di + 1)
                              + (Du + 3 * Di) * H1 + H1 * H2 + H2
                              + H1 + H2 + 1))

    # NOTE: weights/biases use a constant index_map (kept VMEM-resident).  If
    # the projection ever grows large, single-buffer them via
    # pipeline_mode=pl.Buffered(...) to avoid a redundant second copy.
    # NOTE: on v6e, casting seq/user/item embeddings + weights to bf16 (keeping
    # preferred_element_type=f32) halves the dominant HBM stream.
    grid_spec = pltpu.PrefetchScalarGridSpec(
        num_scalar_prefetch=0,
        grid=(nb,),
        in_specs=[
            pl.BlockSpec((tb, S, Di), lambda b: (b, 0, 0)),   # seq_emb
            pl.BlockSpec((tb, S, 1), lambda b: (b, 0, 0)),    # mask
            pl.BlockSpec((tb, Du), lambda b: (b, 0)),         # user_emb
            pl.BlockSpec((tb, Di), lambda b: (b, 0)),         # item_emb
            pl.BlockSpec((Du, H1), lambda b: (0, 0)),         # w1 (user block)
            pl.BlockSpec((Di, H1), lambda b: (0, 0)),         # w1 (item block)
            pl.BlockSpec((Di, H1), lambda b: (0, 0)),         # w1 (mean block)
            pl.BlockSpec((Di, H1), lambda b: (0, 0)),         # w1 (cross block)
            pl.BlockSpec((1, H1), lambda b: (0, 0)),          # b1
            pl.BlockSpec((H1, H2), lambda b: (0, 0)),         # w2
            pl.BlockSpec((1, H2), lambda b: (0, 0)),          # b2
            pl.BlockSpec((H2, 1), lambda b: (0, 0)),          # w3
            pl.BlockSpec((1, 1), lambda b: (0, 0)),           # b3
        ],
        out_specs=[
            pl.BlockSpec((tb, 1), lambda b: (b, 0)),          # score
            pl.BlockSpec((tb, Di), lambda b: (b, 0)),         # mean_emb
        ],
    )

    score_pad, mean_pad = pl.pallas_call(
        _pnn_kernel,
        out_shape=(jax.ShapeDtypeStruct((B_pad, 1), jnp.float32),
                   jax.ShapeDtypeStruct((B_pad, Di), jnp.float32)),
        grid_spec=grid_spec,
        compiler_params=pltpu.CompilerParams(
            dimension_semantics=("parallel",),
            vmem_limit_bytes=32 * 1024 * 1024,
        ),
        cost_estimate=pl.CostEstimate(
            flops=flops, transcendentals=int(B_pad),
            bytes_accessed=bytes_accessed),
    )(seq_emb, mask3, user_emb, item_emb,
      w1u, w1i, w1m, w1x, b1, w2, b2, w3, b3)

    return score_pad[:B], mean_pad[:B]


def _reference(user_emb, item_emb, seq_emb, seq_mask, params):
    # Pure-JAX mirror of PNN.forward's score path (mean_pooling + cross + MLP).
    length = jnp.sum(seq_mask, axis=-1)
    pooled = jnp.sum(seq_emb * seq_mask[..., None], axis=-2)
    mean_emb = pooled / jnp.maximum(length[..., None], 1.0)
    feat = jnp.concatenate(
        [user_emb, item_emb, mean_emb, item_emb * mean_emb], axis=-1)
    h = jax.nn.relu(feat @ params["w1"] + params["b1"])
    h = jax.nn.relu(h @ params["w2"] + params["b2"])
    logits = h @ params["w3"] + params["b3"]
    return jax.nn.sigmoid(logits), mean_emb


if __name__ == "__main__":
    key = jax.random.PRNGKey(0)

    # Small shapes consistent with the module.
    B = 8            # batch
    S = 8            # behavior sequence length
    K = 8            # kv_dimension
    n_user_feat = 2  # args.user_fea_name
    n_item_feat = 2  # args.item_fea_name (first one is adgroup_id)
    vocab = 32       # embedding table size per feature
    H1, H2 = 32, 16  # args.dim_hidden = "32,16,1"

    Du = n_user_feat * K
    Di = n_item_feat * K
    Dfeat = (n_user_feat + 3 * n_item_feat) * K   # = Du + 3*Di

    keys = jax.random.split(key, 16)

    # Embedding tables: normal(0, K**-0.5), padding_idx=0 row zeroed.
    def make_table(k, size, dim):
        t = jax.random.normal(k, (size, dim), dtype=jnp.float32) * (dim ** -0.5)
        return t.at[0].set(0.0)

    user_tables = [make_table(keys[i], vocab, K) for i in range(n_user_feat)]
    item_tables = [make_table(keys[2 + i], vocab, K) for i in range(n_item_feat)]

    # Integer id inputs; 0 in the sequences means padding (drives the mask).
    user_ids = [jax.random.randint(keys[4 + i], (B,), 1, vocab)
                for i in range(n_user_feat)]
    item_ids = [jax.random.randint(keys[6 + i], (B,), 1, vocab)
                for i in range(n_item_feat)]
    seq_ids = [jax.random.randint(keys[8 + i], (B, S), 0, vocab)
               for i in range(n_item_feat)]
    adgroup_id_seq = seq_ids[0]

    # PredictionLayer params (Linear weights stored transposed as (in, out),
    # biases zero-initialized as in the module).
    def xavier(k, fan_in, fan_out):
        bound = math.sqrt(6.0 / (fan_in + fan_out))
        return jax.random.uniform(k, (fan_in, fan_out), minval=-bound,
                                  maxval=bound, dtype=jnp.float32)

    params = {
        "w1": xavier(keys[10], Dfeat, H1), "b1": jnp.zeros((H1,), jnp.float32),
        "w2": xavier(keys[11], H1, H2),    "b2": jnp.zeros((H2,), jnp.float32),
        "w3": xavier(keys[12], H2, 1),     "b3": jnp.zeros((1,), jnp.float32),
    }

    # Embedding lookups (gathers) in plain JAX; pooling/cross/MLP in Pallas.
    # TODO(synk): the nn.Embedding gathers stay outside the kernel (data-
    # dependent HBM gather); the training-branch BCE loss + WindowAUC metric
    # are host-side Python and are not kernelized.
    user_emb = jnp.concatenate([jnp.take(t, ids, axis=0)
                                for t, ids in zip(user_tables, user_ids)], axis=-1)
    item_emb = jnp.concatenate([jnp.take(t, ids, axis=0)
                                for t, ids in zip(item_tables, item_ids)], axis=-1)
    seq_emb = jnp.concatenate([jnp.take(t, ids, axis=0)
                               for t, ids in zip(item_tables, seq_ids)], axis=-1)
    seq_mask = (adgroup_id_seq != 0).astype(jnp.float32)    # get_mask

    score, mean_emb = pnn_forward_pallas(user_emb, item_emb, seq_emb,
                                         seq_mask, params)
    score = jax.block_until_ready(score)
    mean_emb = jax.block_until_ready(mean_emb)

    ref_score, ref_mean = _reference(user_emb, item_emb, seq_emb, seq_mask, params)

    assert score.shape == (B, 1)
    assert mean_emb.shape == (B, Di)
    # Tolerance loosened vs 1e-5 because the pooling divide uses the EUP
    # approximate reciprocal (per performance review).
    assert jnp.allclose(mean_emb, ref_mean, atol=5e-3, rtol=5e-3), (
        float(jnp.max(jnp.abs(mean_emb - ref_mean))))
    assert jnp.allclose(score, ref_score, atol=5e-3, rtol=5e-3), (
        float(jnp.max(jnp.abs(score - ref_score))))

    print("KERNEL_OK")
</pallas_src>

<mosaic_0001>
module attributes {stable_mosaic.version = 11 : i64} {
  func.func @_pnn_kernel(%arg0: i32, %arg1: memref<8x8x16xf32, #tpu.memory_space<vmem>>, %arg2: memref<8x8x1xf32, #tpu.memory_space<vmem>>, %arg3: memref<8x16xf32, #tpu.memory_space<vmem>>, %arg4: memref<8x16xf32, #tpu.memory_space<vmem>>, %arg5: memref<16x32xf32, #tpu.memory_space<vmem>>, %arg6: memref<16x32xf32, #tpu.memory_space<vmem>>, %arg7: memref<16x32xf32, #tpu.memory_space<vmem>>, %arg8: memref<16x32xf32, #tpu.memory_space<vmem>>, %arg9: memref<1x32xf32, #tpu.memory_space<vmem>>, %arg10: memref<32x16xf32, #tpu.memory_space<vmem>>, %arg11: memref<1x16xf32, #tpu.memory_space<vmem>>, %arg12: memref<16x1xf32, #tpu.memory_space<vmem>>, %arg13: memref<1x1xf32, #tpu.memory_space<vmem>>, %arg14: memref<8x1xf32, #tpu.memory_space<vmem>>, %arg15: memref<8x16xf32, #tpu.memory_space<vmem>>) attributes {dimension_semantics = [#tpu.dimension_semantics<parallel>], iteration_bounds = array<i64: 1>, scalar_prefetch = 0 : i64, scratch_operands = 0 : i64, tpu.core_type = #tpu.core_type<tc>, window_params = [{transform_indices = @transform_0, window_bounds = array<i64: 8, 8, 16>}, {transform_indices = @transform_1, window_bounds = array<i64: 8, 8, 1>}, {transform_indices = @transform_2, window_bounds = array<i64: 8, 16>}, {transform_indices = @transform_3, window_bounds = array<i64: 8, 16>}, {pipeline_mode = #tpu.pipeline_mode<synchronous>, transform_indices = @transform_4, window_bounds = array<i64: 16, 32>}, {pipeline_mode = #tpu.pipeline_mode<synchronous>, transform_indices = @transform_5, window_bounds = array<i64: 16, 32>}, {pipeline_mode = #tpu.pipeline_mode<synchronous>, transform_indices = @transform_6, window_bounds = array<i64: 16, 32>}, {pipeline_mode = #tpu.pipeline_mode<synchronous>, transform_indices = @transform_7, window_bounds = array<i64: 16, 32>}, {pipeline_mode = #tpu.pipeline_mode<synchronous>, transform_indices = @transform_8, window_bounds = array<i64: 1, 32>}, {pipeline_mode = #tpu.pipeline_mode<synchronous>, transform_indices = @transform_9, window_bounds = array<i64: 32, 16>}, {pipeline_mode = #tpu.pipeline_mode<synchronous>, transform_indices = @transform_10, window_bounds = array<i64: 1, 16>}, {pipeline_mode = #tpu.pipeline_mode<synchronous>, transform_indices = @transform_11, window_bounds = array<i64: 16, 1>}, {pipeline_mode = #tpu.pipeline_mode<synchronous>, transform_indices = @transform_12, window_bounds = array<i64: 1, 1>}, {transform_indices = @transform_13, window_bounds = array<i64: 8, 1>}, {transform_indices = @transform_14, window_bounds = array<i64: 8, 16>}]} {
    %c0 = arith.constant 0 : index
    %c0_0 = arith.constant 0 : index
    %c0_1 = arith.constant 0 : index
    %0 = vector.load %arg1[%c0, %c0_0, %c0_1] : memref<8x8x16xf32, #tpu.memory_space<vmem>>, vector<8x8x16xf32>
    %c0_2 = arith.constant 0 : index
    %c0_3 = arith.constant 0 : index
    %c0_4 = arith.constant 0 : index
    %1 = vector.load %arg2[%c0_2, %c0_3, %c0_4] : memref<8x8x1xf32, #tpu.memory_space<vmem>>, vector<8x8x1xf32>
    %2 = vector.broadcast %1 : vector<8x8x1xf32> to vector<8x8x16xf32>
    %3 = arith.mulf %0, %2 : vector<8x8x16xf32>
    %cst = arith.constant dense<0.000000e+00> : vector<8x16xf32>
    %4 = vector.multi_reduction <add>, %3, %cst [1] : vector<8x8x16xf32> to vector<8x16xf32>
    %cst_5 = arith.constant dense<0.000000e+00> : vector<8x1xf32>
    %5 = vector.multi_reduction <add>, %1, %cst_5 [1] : vector<8x8x1xf32> to vector<8x1xf32>
    %cst_6 = arith.constant 1.000000e+00 : f32
    %6 = vector.broadcast %cst_6 : f32 to vector<8x1xf32>
    %7 = arith.maximumf %5, %6 : vector<8x1xf32>
    %8 = tpu.reciprocal %7 {approx = true} : vector<8x1xf32> -> vector<8x1xf32>
    %9 = vector.broadcast %8 : vector<8x1xf32> to vector<8x16xf32>
    %10 = arith.mulf %4, %9 : vector<8x16xf32>
    %c0_7 = arith.constant 0 : index
    %c0_8 = arith.constant 0 : index
    %11 = vector.load %arg3[%c0_7, %c0_8] : memref<8x16xf32, #tpu.memory_space<vmem>>, vector<8x16xf32>
    %c0_9 = arith.constant 0 : index
    %c0_10 = arith.constant 0 : index
    %12 = vector.load %arg4[%c0_9, %c0_10] : memref<8x16xf32, #tpu.memory_space<vmem>>, vector<8x16xf32>
    %13 = arith.mulf %12, %10 : vector<8x16xf32>
    %c0_11 = arith.constant 0 : index
    %c0_12 = arith.constant 0 : index
    %14 = vector.load %arg5[%c0_11, %c0_12] : memref<16x32xf32, #tpu.memory_space<vmem>>, vector<16x32xf32>
    %cst_13 = arith.constant dense<0.000000e+00> : vector<8x32xf32>
    %15 = tpu.matmul %11, %14, %cst_13 {dimension_numbers = #tpu.dot_dimension_numbers<[1], [0], [0], [1], [0, 0, 1, 1], [], []>} : vector<8x16xf32>, vector<16x32xf32>, vector<8x32xf32> -> vector<8x32xf32>
    %c0_14 = arith.constant 0 : index
    %c0_15 = arith.constant 0 : index
    %16 = vector.load %arg6[%c0_14, %c0_15] : memref<16x32xf32, #tpu.memory_space<vmem>>, vector<16x32xf32>
    %cst_16 = arith.constant dense<0.000000e+00> : vector<8x32xf32>
    %17 = tpu.matmul %12, %16, %cst_16 {dimension_numbers = #tpu.dot_dimension_numbers<[1], [0], [0], [1], [0, 0, 1, 1], [], []>} : vector<8x16xf32>, vector<16x32xf32>, vector<8x32xf32> -> vector<8x32xf32>
    %18 = arith.addf %15, %17 : vector<8x32xf32>
    %c0_17 = arith.constant 0 : index
    %c0_18 = arith.constant 0 : index
    %19 = vector.load %arg7[%c0_17, %c0_18] : memref<16x32xf32, #tpu.memory_space<vmem>>, vector<16x32xf32>
    %cst_19 = arith.constant dense<0.000000e+00> : vector<8x32xf32>
    %20 = tpu.matmul %10, %19, %cst_19 {dimension_numbers = #tpu.dot_dimension_numbers<[1], [0], [0], [1], [0, 0, 1, 1], [], []>} : vector<8x16xf32>, vector<16x32xf32>, vector<8x32xf32> -> vector<8x32xf32>
    %21 = arith.addf %18, %20 : vector<8x32xf32>
    %c0_20 = arith.constant 0 : index
    %c0_21 = arith.constant 0 : index
    %22 = vector.load %arg8[%c0_20, %c0_21] : memref<16x32xf32, #tpu.memory_space<vmem>>, vector<16x32xf32>
    %cst_22 = arith.constant dense<0.000000e+00> : vector<8x32xf32>
    %23 = tpu.matmul %13, %22, %cst_22 {dimension_numbers = #tpu.dot_dimension_numbers<[1], [0], [0], [1], [0, 0, 1, 1], [], []>} : vector<8x16xf32>, vector<16x32xf32>, vector<8x32xf32> -> vector<8x32xf32>
    %24 = arith.addf %21, %23 : vector<8x32xf32>
    %c0_23 = arith.constant 0 : index
    %c0_24 = arith.constant 0 : index
    %25 = vector.load %arg9[%c0_23, %c0_24] : memref<1x32xf32, #tpu.memory_space<vmem>>, vector<1x32xf32>
    %26 = vector.broadcast %25 : vector<1x32xf32> to vector<8x32xf32>
    %27 = arith.addf %24, %26 : vector<8x32xf32>
    %cst_25 = arith.constant 0.000000e+00 : f32
    %28 = vector.broadcast %cst_25 : f32 to vector<8x32xf32>
    %29 = arith.maximumf %27, %28 : vector<8x32xf32>
    %c0_26 = arith.constant 0 : index
    %c0_27 = arith.constant 0 : index
    %30 = vector.load %arg10[%c0_26, %c0_27] : memref<32x16xf32, #tpu.memory_space<vmem>>, vector<32x16xf32>
    %cst_28 = arith.constant dense<0.000000e+00> : vector<8x16xf32>
    %31 = tpu.matmul %29, %30, %cst_28 {dimension_numbers = #tpu.dot_dimension_numbers<[1], [0], [0], [1], [0, 0, 1, 1], [], []>} : vector<8x32xf32>, vector<32x16xf32>, vector<8x16xf32> -> vector<8x16xf32>
    %c0_29 = arith.constant 0 : index
    %c0_30 = arith.constant 0 : index
    %32 = vector.load %arg11[%c0_29, %c0_30] : memref<1x16xf32, #tpu.memory_space<vmem>>, vector<1x16xf32>
    %33 = vector.broadcast %32 : vector<1x16xf32> to vector<8x16xf32>
    %34 = arith.addf %31, %33 : vector<8x16xf32>
    %cst_31 = arith.constant 0.000000e+00 : f32
    %35 = vector.broadcast %cst_31 : f32 to vector<8x16xf32>
    %36 = arith.maximumf %34, %35 : vector<8x16xf32>
    %c0_32 = arith.constant 0 : index
    %c0_33 = arith.constant 0 : index
    %37 = vector.load %arg12[%c0_32, %c0_33] : memref<16x1xf32, #tpu.memory_space<vmem>>, vector<16x1xf32>
    %cst_34 = arith.constant dense<0.000000e+00> : vector<8x1xf32>
    %38 = tpu.matmul %36, %37, %cst_34 {dimension_numbers = #tpu.dot_dimension_numbers<[1], [0], [0], [1], [0, 0, 1, 1], [], []>} : vector<8x16xf32>, vector<16x1xf32>, vector<8x1xf32> -> vector<8x1xf32>
    %c0_35 = arith.constant 0 : index
    %c0_36 = arith.constant 0 : index
    %39 = vector.load %arg13[%c0_35, %c0_36] : memref<1x1xf32, #tpu.memory_space<vmem>>, vector<1x1xf32>
    %40 = vector.broadcast %39 : vector<1x1xf32> to vector<8x1xf32>
    %41 = arith.addf %38, %40 : vector<8x1xf32>
    %cst_37 = arith.constant 0.000000e+00 : f32
    %42 = vector.broadcast %cst_37 : f32 to vector<8x1xf32>
    %43 = arith.subf %42, %41 : vector<8x1xf32>
    %44 = math.exp %43 : vector<8x1xf32>
    %cst_38 = arith.constant 1.000000e+00 : f32
    %45 = vector.broadcast %cst_38 : f32 to vector<8x1xf32>
    %46 = arith.addf %45, %44 : vector<8x1xf32>
    %cst_39 = arith.constant 1.000000e+00 : f32
    %47 = vector.broadcast %cst_39 : f32 to vector<8x1xf32>
    %48 = arith.divf %47, %46 : vector<8x1xf32>
    %c0_40 = arith.constant 0 : index
    %c0_41 = arith.constant 0 : index
    %49 = vector.load %arg14[%c0_40, %c0_41] : memref<8x1xf32, #tpu.memory_space<vmem>>, vector<8x1xf32>
    tpu.vector_store %arg14[%c0_40, %c0_41], %48 {strides = array<i32>} : memref<8x1xf32, #tpu.memory_space<vmem>>, vector<8x1xf32>,
    %c0_42 = arith.constant 0 : index
    %c0_43 = arith.constant 0 : index
    %50 = vector.load %arg15[%c0_42, %c0_43] : memref<8x16xf32, #tpu.memory_space<vmem>>, vector<8x16xf32>
    tpu.vector_store %arg15[%c0_42, %c0_43], %10 {strides = array<i32>} : memref<8x16xf32, #tpu.memory_space<vmem>>, vector<8x16xf32>,
    return
  }
  func.func @transform_0(%arg0: i32) -> (i32, i32, i32) {
    %c0_i32 = arith.constant 0 : i32
    %c0_i32_0 = arith.constant 0 : i32
    %c0_i32_1 = arith.constant 0 : i32
    return %arg0, %c0_i32, %c0_i32_0 : i32, i32, i32
  }
  func.func @transform_1(%arg0: i32) -> (i32, i32, i32) {
    %c0_i32 = arith.constant 0 : i32
    %c0_i32_0 = arith.constant 0 : i32
    %c0_i32_1 = arith.constant 0 : i32
    return %arg0, %c0_i32, %c0_i32_0 : i32, i32, i32
  }
  func.func @transform_2(%arg0: i32) -> (i32, i32) {
    %c0_i32 = arith.constant 0 : i32
    %c0_i32_0 = arith.constant 0 : i32
    return %arg0, %c0_i32 : i32, i32
  }
  func.func @transform_3(%arg0: i32) -> (i32, i32) {
    %c0_i32 = arith.constant 0 : i32
    %c0_i32_0 = arith.constant 0 : i32
    return %arg0, %c0_i32 : i32, i32
  }
  func.func @transform_4(%arg0: i32) -> (i32, i32) {
    %c0_i32 = arith.constant 0 : i32
    %c0_i32_0 = arith.constant 0 : i32
    %c0_i32_1 = arith.constant 0 : i32
    return %c0_i32, %c0_i32_0 : i32, i32
  }
  func.func @transform_5(%arg0: i32) -> (i32, i32) {
    %c0_i32 = arith.constant 0 : i32
    %c0_i32_0 = arith.constant 0 : i32
    %c0_i32_1 = arith.constant 0 : i32
    return %c0_i32, %c0_i32_0 : i32, i32
  }
  func.func @transform_6(%arg0: i32) -> (i32, i32) {
    %c0_i32 = arith.constant 0 : i32
    %c0_i32_0 = arith.constant 0 : i32
    %c0_i32_1 = arith.constant 0 : i32
    return %c0_i32, %c0_i32_0 : i32, i32
  }
  func.func @transform_7(%arg0: i32) -> (i32, i32) {
    %c0_i32 = arith.constant 0 : i32
    %c0_i32_0 = arith.constant 0 : i32
    %c0_i32_1 = arith.constant 0 : i32
    return %c0_i32, %c0_i32_0 : i32, i32
  }
  func.func @transform_8(%arg0: i32) -> (i32, i32) {
    %c0_i32 = arith.constant 0 : i32
    %c0_i32_0 = arith.constant 0 : i32
    %c0_i32_1 = arith.constant 0 : i32
    return %c0_i32, %c0_i32_0 : i32, i32
  }
  func.func @transform_9(%arg0: i32) -> (i32, i32) {
    %c0_i32 = arith.constant 0 : i32
    %c0_i32_0 = arith.constant 0 : i32
    %c0_i32_1 = arith.constant 0 : i32
    return %c0_i32, %c0_i32_0 : i32, i32
  }
  func.func @transform_10(%arg0: i32) -> (i32, i32) {
    %c0_i32 = arith.constant 0 : i32
    %c0_i32_0 = arith.constant 0 : i32
    %c0_i32_1 = arith.constant 0 : i32
    return %c0_i32, %c0_i32_0 : i32, i32
  }
  func.func @transform_11(%arg0: i32) -> (i32, i32) {
    %c0_i32 = arith.constant 0 : i32
    %c0_i32_0 = arith.constant 0 : i32
    %c0_i32_1 = arith.constant 0 : i32
    return %c0_i32, %c0_i32_0 : i32, i32
  }
  func.func @transform_12(%arg0: i32) -> (i32, i32) {
    %c0_i32 = arith.constant 0 : i32
    %c0_i32_0 = arith.constant 0 : i32
    %c0_i32_1 = arith.constant 0 : i32
    return %c0_i32, %c0_i32_0 : i32, i32
  }
  func.func @transform_13(%arg0: i32) -> (i32, i32) {
    %c0_i32 = arith.constant 0 : i32
    %c0_i32_0 = arith.constant 0 : i32
    return %arg0, %c0_i32 : i32, i32
  }
  func.func @transform_14(%arg0: i32) -> (i32, i32) {
    %c0_i32 = arith.constant 0 : i32
    %c0_i32_0 = arith.constant 0 : i32
    return %arg0, %c0_i32 : i32, i32
  }
}

</mosaic_0001>

<llo_original>
// kernel: tpu_custom_call.1
$region0: #{tpu_custom_call.1}
  #allocation0 [shape = 'u32[]', space=smem, size = 0x4, offset = 0x4, fixed_abs, tag = 'smem constant byte address 0x4 - core index']
  #allocation1 [shape = 'u32[144,128]{1,0:T(1,128)}', space=vmem, size = 0x12000, scoped, tag = 'internal scratch']
  #allocation2 [shape = 'f32[1,1]{1,0:T(1,128)S(1)}', space=vmem, size = 0x200, scoped, tag = 'scoped memory for tpu_custom_call.1']
  %s0 = inlined_call_operand.vmem [shape: f32[8,8,16], index: 0, kind: input, shape index: {}]
  %s1 = inlined_call_operand.vmem [shape: f32[8,8,1], index: 1, kind: input, shape index: {}]
  %s2 = inlined_call_operand.hbm [shape: f32[8,16], index: 2, kind: input, shape index: {}]
  %s3 = inlined_call_operand.hbm [shape: f32[8,16], index: 3, kind: input, shape index: {}]
  %s4 = inlined_call_operand.vmem [shape: f32[16,32], index: 4, kind: input, shape index: {}]
  %s5 = inlined_call_operand.vmem [shape: f32[16,32], index: 5, kind: input, shape index: {}]
  %s6 = inlined_call_operand.vmem [shape: f32[16,32], index: 6, kind: input, shape index: {}]
  %s7 = inlined_call_operand.vmem [shape: f32[16,32], index: 7, kind: input, shape index: {}]
  %s8 = inlined_call_operand.vmem [shape: f32[1,32], index: 8, kind: input, shape index: {}]
  %s9 = inlined_call_operand.vmem [shape: f32[32,16], index: 9, kind: input, shape index: {}]
  %s10 = inlined_call_operand.vmem [shape: f32[1,16], index: 10, kind: input, shape index: {}]
  %s11 = inlined_call_operand.vmem [shape: f32[16,1], index: 11, kind: input, shape index: {}]
  %s12 = inlined_call_operand.<no memory space> [shape: f32[1,1], index: 12, kind: input, shape index: {}]
  %s13 = inlined_call_operand.vmem [shape: f32[8,1], index: 13, kind: output, shape index: {0}]
  %s14 = inlined_call_operand.hbm [shape: f32[8,16], index: 14, kind: output, shape index: {1}]
  %15 = xla_tuple %s13, %s14
  %s16 = sld [smem:[#allocation0]]
  $region78: #{tpu_custom_call.1} parent=0
    _
  %s18 = ssub.s32 1, %s16
  %s19 = scalar_select 0, %s18, %s16
  %v20 = vstv %s12
  %21 = vst [vmem:[#allocation2] sm:$0x1] %v20
  $region1: #{tpu_custom_call.1} parent=0
    #allocation3 [shape = 'u8[4096]{0}', space=vmem, size = 0x1000, scoped, tag = 'input window, operand 2, single buffered']
    #allocation4 [shape = 's32[1]{0}', space=sflag, size = 0x4, scoped, tag = 'scoped memory for tpu_custom_call.1']
    #allocation5 [shape = 's32[1]{0}', space=sflag, size = 0x4, scoped, tag = 'scoped memory for tpu_custom_call.1']
    #allocation6 [shape = 'u8[4096]{0}', space=vmem, size = 0x1000, scoped, tag = 'input window, operand 3, single buffered']
    #allocation7 [shape = 's32[1]{0}', space=sflag, size = 0x4, scoped, tag = 'scoped memory for tpu_custom_call.1']
    #allocation8 [shape = 'u8[4096]{0}', space=vmem, size = 0x1000, scoped, tag = 'output window, operand 1, single buffered']
    %22 = vsyncpa [#allocation4], 0
    %23 = vsyncpa [#allocation7], 0
    %24 = vsyncpa [#allocation5], 0
    // Predicated region
    $region2: #{tpu_custom_call.1} parent=1 // pred_check
      _
    $region3: #{tpu_custom_call.1} parent=1 // pred_check_branch
      %26 = sbr.rel (0) target = $region5
    $region4: #{tpu_custom_call.1} parent=1 // pred_region
      _
    $region5: #{tpu_custom_call.1} parent=1 // pred_fallthru
      _
    // Predicated region
    $region6: #{tpu_custom_call.1} parent=1 // pred_check
      _
    $region7: #{tpu_custom_call.1} parent=1 // pred_check_branch
      %28 = sbr.rel (0) target = $region9
    $region8: #{tpu_custom_call.1} parent=1 // pred_region
      _
    $region9: #{tpu_custom_call.1} parent=1 // pred_fallthru
      _
    // Predicated region
    $region10: #{tpu_custom_call.1} parent=1 // pred_check
      _
    $region11: #{tpu_custom_call.1} parent=1 // pred_check_branch
      %30 = sbr.rel (0) target = $region13
    $region12: #{tpu_custom_call.1} parent=1 // pred_region
      %s32 = ssub.s32 128, 128
      %33 = vsyncadd [#allocation4], %s32
      %s35 = sshll.u32 [#allocation3], 4
      %s36 = int_to_ptr.vmem [resolvable:$true] %s35
      %38 = dma.hbm_to_vmem [thread:$0]  %s2, 128, %s36, [#allocation4]
    $region13: #{tpu_custom_call.1} parent=1 // pred_fallthru
      _
    // Predicated region
    $region14: #{tpu_custom_call.1} parent=1 // pred_check
      _
    $region15: #{tpu_custom_call.1} parent=1 // pred_check_branch
      %40 = sbr.rel (0) target = $region17
    $region16: #{tpu_custom_call.1} parent=1 // pred_region
      %s42 = ssub.s32 128, 128
      %43 = vsyncadd [#allocation7], %s42
      %s45 = sshll.u32 [#allocation6], 4
      %s46 = int_to_ptr.vmem [resolvable:$true] %s45
      %48 = dma.hbm_to_vmem [thread:$0]  %s3, 128, %s46, [#allocation7]
    $region17: #{tpu_custom_call.1} parent=1 // pred_fallthru
      _
    // Predicated region
    $region18: #{tpu_custom_call.1} parent=1 // pred_check
      _
    $region19: #{tpu_custom_call.1} parent=1 // pred_check_branch
      %50 = sbr.rel (0) target = $region21
    $region20: #{tpu_custom_call.1} parent=1 // pred_region
      _
    $region21: #{tpu_custom_call.1} parent=1 // pred_fallthru
      _
    // Predicated region
    $region22: #{tpu_custom_call.1} parent=1 // pred_check
      _
    $region23: #{tpu_custom_call.1} parent=1 // pred_check_branch
      %52 = sbr.rel (0) target = $region25
    $region24: #{tpu_custom_call.1} parent=1 // pred_region
      _
    $region25: #{tpu_custom_call.1} parent=1 // pred_fallthru
      _
    // Predicated region
    $region26: #{tpu_custom_call.1} parent=1 // pred_check
      _
    $region27: #{tpu_custom_call.1} parent=1 // pred_check_branch
      %54 = sbr.rel (0) target = $region29
    $region28: #{tpu_custom_call.1} parent=1 // pred_region
      _
    $region29: #{tpu_custom_call.1} parent=1 // pred_fallthru
      _
    // Predicated region
    $region30: #{tpu_custom_call.1} parent=1 // pred_check
      _
    $region31: #{tpu_custom_call.1} parent=1 // pred_check_branch
      %56 = sbr.rel (0) target = $region33
    $region32: #{tpu_custom_call.1} parent=1 // pred_region
      _
    $region33: #{tpu_custom_call.1} parent=1 // pred_fallthru
      _
    // Predicated region
    $region34: #{tpu_custom_call.1} parent=1 // pred_check
      _
    $region35: #{tpu_custom_call.1} parent=1 // pred_check_branch
      %58 = sbr.rel (0) target = $region37
    $region36: #{tpu_custom_call.1} parent=1 // pred_region
      _
    $region37: #{tpu_custom_call.1} parent=1 // pred_fallthru
      _
    // Predicated region
    $region38: #{tpu_custom_call.1} parent=1 // pred_check
      _
    $region39: #{tpu_custom_call.1} parent=1 // pred_check_branch
      %60 = sbr.rel (0) target = $region41
    $region40: #{tpu_custom_call.1} parent=1 // pred_region
      _
    $region41: #{tpu_custom_call.1} parent=1 // pred_fallthru
      _
    // Predicated region
    $region42: #{tpu_custom_call.1} parent=1 // pred_check
      _
    $region43: #{tpu_custom_call.1} parent=1 // pred_check_branch
      %62 = sbr.rel (0) target = $region45
    $region44: #{tpu_custom_call.1} parent=1 // pred_region
      _
    $region45: #{tpu_custom_call.1} parent=1 // pred_fallthru
      _
    // Predicated region
    $region46: #{tpu_custom_call.1} parent=1 // pred_check
      _
    $region47: #{tpu_custom_call.1} parent=1 // pred_check_branch
      %64 = sbr.rel (0) target = $region49
    $region48: #{tpu_custom_call.1} parent=1 // pred_region
      _
    $region49: #{tpu_custom_call.1} parent=1 // pred_fallthru
      _
    // Predicated region
    $region50: #{tpu_custom_call.1} parent=1 // pred_check
      _
    $region51: #{tpu_custom_call.1} parent=1 // pred_check_branch
      %66 = sbr.rel (0) target = $region53
    $region52: #{tpu_custom_call.1} parent=1 // pred_region
      _
    $region53: #{tpu_custom_call.1} parent=1 // pred_fallthru
      _
    // Predicated region
    $region54: #{tpu_custom_call.1} parent=1 // pred_check
      _
    $region55: #{tpu_custom_call.1} parent=1 // pred_check_branch
      %68 = sbr.rel (0) target = $region57
    $region56: #{tpu_custom_call.1} parent=1 // pred_region
      %69 = dma.done [#allocation4], 128
    $region57: #{tpu_custom_call.1} parent=1 // pred_fallthru
      _
    // Predicated region
    $region58: #{tpu_custom_call.1} parent=1 // pred_check
      _
    $region59: #{tpu_custom_call.1} parent=1 // pred_check_branch
      %71 = sbr.rel (0) target = $region61
    $region60: #{tpu_custom_call.1} parent=1 // pred_region
      %72 = dma.done [#allocation7], 128
    $region61: #{tpu_custom_call.1} parent=1 // pred_fallthru
      _
    %v73 = vld [vmem:[%s0] sm:$0xff]
    %v74 = vld [vmem:[%s0 + $0x8] sm:$0xff]
    %v75 = vld [vmem:[%s0 + $0x10] sm:$0xff]
    %v76 = vld [vmem:[%s0 + $0x18] sm:$0xff]
    %v77 = vld [vmem:[%s0 + $0x20] sm:$0xff]
    %v78 = vld [vmem:[%s0 + $0x28] sm:$0xff]
    %v79 = vld [vmem:[%s0 + $0x30] sm:$0xff]
    %v80 = vld [vmem:[%s0 + $0x38] sm:$0xff]
    %v81 = vld [vmem:[%s1] sm:$0xff]
    %v82 = vld [vmem:[%s1 + $0x8] sm:$0xff]
    %v83 = vld [vmem:[%s1 + $0x10] sm:$0xff]
    %v84 = vld [vmem:[%s1 + $0x18] sm:$0xff]
    %v85 = vld [vmem:[%s1 + $0x20] sm:$0xff]
    %v86 = vld [vmem:[%s1 + $0x28] sm:$0xff]
    %v87 = vld [vmem:[%s1 + $0x30] sm:$0xff]
    %v88 = vld [vmem:[%s1 + $0x38] sm:$0xff]
    %90 = vset.pattern.permute.xlu0 0
    %91 = vperm.xlu0 %90, %v81
    %v92 = vpop.permute.xlu0 %91
    %95 = vset.pattern.permute.xlu0 0
    %96 = vperm.xlu0 %95, %v82
    %v97 = vpop.permute.xlu0 %96
    %100 = vset.pattern.permute.xlu0 0
    %101 = vperm.xlu0 %100, %v83
    %v102 = vpop.permute.xlu0 %101
    %105 = vset.pattern.permute.xlu0 0
    %106 = vperm.xlu0 %105, %v84
    %v107 = vpop.permute.xlu0 %106
    %110 = vset.pattern.permute.xlu0 0
    %111 = vperm.xlu0 %110, %v85
    %v112 = vpop.permute.xlu0 %111
    %115 = vset.pattern.permute.xlu0 0
    %116 = vperm.xlu0 %115, %v86
    %v117 = vpop.permute.xlu0 %116
    %120 = vset.pattern.permute.xlu0 0
    %121 = vperm.xlu0 %120, %v87
    %v122 = vpop.permute.xlu0 %121
    %125 = vset.pattern.permute.xlu0 0
    %126 = vperm.xlu0 %125, %v88
    %v127 = vpop.permute.xlu0 %126
    %v129 = vmul.f32 %v73, %v92
    %v130 = vmul.f32 %v74, %v97
    %v131 = vmul.f32 %v75, %v102
    %v132 = vmul.f32 %v76, %v107
    %v133 = vmul.f32 %v77, %v112
    %v134 = vmul.f32 %v78, %v117
    %v135 = vmul.f32 %v79, %v122
    %v136 = vmul.f32 %v80, %v127
    %vm137 = vcmask 130048
    %v138 = vsel %vm137, %v129, 0.0
    %v139 = vrot.slane %v138, 4
    %v140 = vadd.f32 %v138, %v139
    %v141 = vrot.slane %v140, 2
    %v142 = vadd.f32 %v140, %v141
    %v143 = vrot.slane %v142, 1
    %v144 = vadd.f32 %v142, %v143
    %v145 = vsel %vm137, %v130, 0.0
    %v146 = vrot.slane %v145, 4
    %v147 = vadd.f32 %v145, %v146
    %v148 = vrot.slane %v147, 2
    %v149 = vadd.f32 %v147, %v148
    %v150 = vrot.slane %v149, 1
    %v151 = vadd.f32 %v149, %v150
    %v152 = vsel %vm137, %v131, 0.0
    %v153 = vrot.slane %v152, 4
    %v154 = vadd.f32 %v152, %v153
    %v155 = vrot.slane %v154, 2
    %v156 = vadd.f32 %v154, %v155
    %v157 = vrot.slane %v156, 1
    %v158 = vadd.f32 %v156, %v157
    %v159 = vsel %vm137, %v132, 0.0
    %v160 = vrot.slane %v159, 4
    %v161 = vadd.f32 %v159, %v160
    %v162 = vrot.slane %v161, 2
    %v163 = vadd.f32 %v161, %v162
    %v164 = vrot.slane %v163, 1
    %v165 = vadd.f32 %v163, %v164
    %v166 = vsel %vm137, %v133, 0.0
    %v167 = vrot.slane %v166, 4
    %v168 = vadd.f32 %v166, %v167
    %v169 = vrot.slane %v168, 2
    %v170 = vadd.f32 %v168, %v169
    %v171 = vrot.slane %v170, 1
    %v172 = vadd.f32 %v170, %v171
    %v173 = vsel %vm137, %v134, 0.0
    %v174 = vrot.slane %v173, 4
    %v175 = vadd.f32 %v173, %v174
    %v176 = vrot.slane %v175, 2
    %v177 = vadd.f32 %v175, %v176
    %v178 = vrot.slane %v177, 1
    %v179 = vadd.f32 %v177, %v178
    %v180 = vsel %vm137, %v135, 0.0
    %v181 = vrot.slane %v180, 4
    %v182 = vadd.f32 %v180, %v181
    %v183 = vrot.slane %v182, 2
    %v184 = vadd.f32 %v182, %v183
    %v185 = vrot.slane %v184, 1
    %v186 = vadd.f32 %v184, %v185
    %v187 = vsel %vm137, %v136, 0.0
    %v188 = vrot.slane %v187, 4
    %v189 = vadd.f32 %v187, %v188
    %v190 = vrot.slane %v189, 2
    %v191 = vadd.f32 %v189, %v190
    %v192 = vrot.slane %v191, 1
    %v193 = vadd.f32 %v191, %v192
    %vm194 = vcmask 7168
    %v195 = vsel %vm194, %v81, 0.0
    %v196 = vrot.slane %v195, 4
    %v197 = vadd.f32 %v195, %v196
    %v198 = vrot.slane %v197, 2
    %v199 = vadd.f32 %v197, %v198
    %v200 = vrot.slane %v199, 1
    %v201 = vadd.f32 %v199, %v200
    %v202 = vsel %vm194, %v82, 0.0
    %v203 = vrot.slane %v202, 4
    %v204 = vadd.f32 %v202, %v203
    %v205 = vrot.slane %v204, 2
    %v206 = vadd.f32 %v204, %v205
    %v207 = vrot.slane %v206, 1
    %v208 = vadd.f32 %v206, %v207
    %v209 = vsel %vm194, %v83, 0.0
    %v210 = vrot.slane %v209, 4
    %v211 = vadd.f32 %v209, %v210
    %v212 = vrot.slane %v211, 2
    %v213 = vadd.f32 %v211, %v212
    %v214 = vrot.slane %v213, 1
    %v215 = vadd.f32 %v213, %v214
    %v216 = vsel %vm194, %v84, 0.0
    %v217 = vrot.slane %v216, 4
    %v218 = vadd.f32 %v216, %v217
    %v219 = vrot.slane %v218, 2
    %v220 = vadd.f32 %v218, %v219
    %v221 = vrot.slane %v220, 1
    %v222 = vadd.f32 %v220, %v221
    %v223 = vsel %vm194, %v85, 0.0
    %v224 = vrot.slane %v223, 4
    %v225 = vadd.f32 %v223, %v224
    %v226 = vrot.slane %v225, 2
    %v227 = vadd.f32 %v225, %v226
    %v228 = vrot.slane %v227, 1
    %v229 = vadd.f32 %v227, %v228
    %v230 = vsel %vm194, %v86, 0.0
    %v231 = vrot.slane %v230, 4
    %v232 = vadd.f32 %v230, %v231
    %v233 = vrot.slane %v232, 2
    %v234 = vadd.f32 %v232, %v233
    %v235 = vrot.slane %v234, 1
    %v236 = vadd.f32 %v234, %v235
    %v237 = vsel %vm194, %v87, 0.0
    %v238 = vrot.slane %v237, 4
    %v239 = vadd.f32 %v237, %v238
    %v240 = vrot.slane %v239, 2
    %v241 = vadd.f32 %v239, %v240
    %v242 = vrot.slane %v241, 1
    %v243 = vadd.f32 %v241, %v242
    %v244 = vsel %vm194, %v88, 0.0
    %v245 = vrot.slane %v244, 4
    %v246 = vadd.f32 %v244, %v245
    %v247 = vrot.slane %v246, 2
    %v248 = vadd.f32 %v246, %v247
    %v249 = vrot.slane %v248, 1
    %v250 = vadd.f32 %v248, %v249
    %v251 = vmax.f32 %v201, 1.0
    %v252 = vmax.f32 %v208, 1.0
    %v253 = vmax.f32 %v215, 1.0
    %v254 = vmax.f32 %v222, 1.0
    %v255 = vmax.f32 %v229, 1.0
    %v256 = vmax.f32 %v236, 1.0
    %v257 = vmax.f32 %v243, 1.0
    %v258 = vmax.f32 %v250, 1.0
    %v259 = vrcp.pop %v251
    %v260 = vrcp.pop %v252
    %v261 = vrcp.pop %v253
    %v262 = vrcp.pop %v254
    %v263 = vrcp.pop %v255
    %v264 = vrcp.pop %v256
    %v265 = vrcp.pop %v257
    %v266 = vrcp.pop %v258
    %268 = vset.pattern.permute.xlu0 0
    %269 = vperm.xlu0 %268, %v259
    %v270 = vpop.permute.xlu0 %269
    %273 = vset.pattern.permute.xlu0 0
    %274 = vperm.xlu0 %273, %v260
    %v275 = vpop.permute.xlu0 %274
    %278 = vset.pattern.permute.xlu0 0
    %279 = vperm.xlu0 %278, %v261
    %v280 = vpop.permute.xlu0 %279
    %283 = vset.pattern.permute.xlu0 0
    %284 = vperm.xlu0 %283, %v262
    %v285 = vpop.permute.xlu0 %284
    %288 = vset.pattern.permute.xlu0 0
    %289 = vperm.xlu0 %288, %v263
    %v290 = vpop.permute.xlu0 %289
    %293 = vset.pattern.permute.xlu0 0
    %294 = vperm.xlu0 %293, %v264
    %v295 = vpop.permute.xlu0 %294
    %298 = vset.pattern.permute.xlu0 0
    %299 = vperm.xlu0 %298, %v265
    %v300 = vpop.permute.xlu0 %299
    %303 = vset.pattern.permute.xlu0 0
    %304 = vperm.xlu0 %303, %v266
    %v305 = vpop.permute.xlu0 %304
    %v307 = vmul.f32 %v144, %v270
    %v308 = vmul.f32 %v151, %v275
    %v309 = vmul.f32 %v158, %v280
    %v310 = vmul.f32 %v165, %v285
    %v311 = vmul.f32 %v172, %v290
    %v312 = vmul.f32 %v179, %v295
    %v313 = vmul.f32 %v186, %v300
    %v314 = vmul.f32 %v193, %v305
    %v315 = vld [vmem:[#allocation3] sm:$0xff]
    %v316 = vld [vmem:[#allocation6] sm:$0xff]
    %vm325 = vcmask 1041409
    %v326 = vsel %vm325, %v308, %v307
    %vm327 = vcmask 1042434
    %v328 = vsel %vm327, %v309, %v326
    %vm329 = vcmask 1043459
    %v330 = vsel %vm329, %v310, %v328
    %vm331 = vcmask 1044484
    %v332 = vsel %vm331, %v311, %v330
    %vm333 = vcmask 1045509
    %v334 = vsel %vm333, %v312, %v332
    %vm335 = vcmask 1046534
    %v336 = vsel %vm335, %v313, %v334
    %vm337 = vcmask 1047559
    %v338 = vsel %vm337, %v314, %v336
    %v340 = vmul.f32 %v316, %v338
    %v341 = vld [vmem:[%s4] sm:$0xff]
    %v342 = vld [vmem:[%s4 + $0x8] sm:$0xff]
    %v343 = vld [vmem:[%s5] sm:$0xff]
    %v344 = vld [vmem:[%s5 + $0x8] sm:$0xff]
    %v346 = vsel %vm137, %v316, 0
    %348 = vmatprep.subr.mxu0 0.0
    %349 = vmatpush1.msra.mxu0 %v343
    %350 = vmatprep.subr.mxu0 0.0
    %351 = vmatpush1.msra.mxu0 %v344
    %352 = vmatprep.subr.mxu0 0.0
    %353 = vmatpush1.msra.mxu0 0.0
    %354 = vmatprep.subr.mxu0 0.0
    %355 = vmatpush1.msra.mxu0 0.0
    %356 = vmatprep.subr.mxu0 0.0
    %357 = vmatpush1.msra.mxu0 0.0
    %358 = vmatprep.subr.mxu0 0.0
    %359 = vmatpush1.msra.mxu0 0.0
    %360 = vmatprep.subr.mxu0 0.0
    %361 = vmatpush1.msra.mxu0 0.0
    %362 = vmatprep.subr.mxu0 0.0
    %363 = vmatpush1.msra.mxu0 0.0
    %364 = vmatprep.subr.mxu0 0.0
    %365 = vmatpush1.msra.mxu0 0.0
    %366 = vmatprep.subr.mxu0 0.0
    %367 = vmatpush1.msra.mxu0 0.0
    %368 = vmatprep.subr.mxu0 0.0
    %369 = vmatpush1.msra.mxu0 0.0
    %370 = vmatprep.subr.mxu0 0.0
    %371 = vmatpush1.msra.mxu0 0.0
    %372 = vmatprep.subr.mxu0 0.0
    %373 = vmatpush1.msra.mxu0 0.0
    %374 = vmatprep.subr.mxu0 0.0
    %375 = vmatpush1.msra.mxu0 0.0
    %376 = vmatprep.subr.mxu0 0.0
    %377 = vmatpush1.msra.mxu0 0.0
    %378 = vmatprep.subr.mxu0 0.0
    %379 = vmatpush1.msra.mxu0 0.0
    %380 = vmatprep.subr.mxu0 0.0
    %381 = vmatpush1.msra.mxu0 0.0
    %382 = vmatprep.subr.mxu0 0.0
    %383 = vmatpush1.msra.mxu0 0.0
    %384 = vmatprep.subr.mxu0 0.0
    %385 = vmatpush1.msra.mxu0 0.0
    %386 = vmatprep.subr.mxu0 0.0
    %387 = vmatpush1.msra.mxu0 0.0
    %388 = vmatprep.subr.mxu0 0.0
    %389 = vmatpush1.msra.mxu0 0.0
    %390 = vmatprep.subr.mxu0 0.0
    %391 = vmatpush1.msra.mxu0 0.0
    %392 = vmatprep.subr.mxu0 0.0
    %393 = vmatpush1.msra.mxu0 0.0
    %394 = vmatprep.subr.mxu0 0.0
    %395 = vmatpush1.msra.mxu0 0.0
    %396 = vmatprep.subr.mxu0 0.0
    %397 = vmatpush1.msra.mxu0 0.0
    %398 = vmatprep.subr.mxu0 0.0
    %399 = vmatpush1.msra.mxu0 0.0
    %400 = vmatprep.subr.mxu0 0.0
    %401 = vmatpush1.msra.mxu0 0.0
    %402 = vmatprep.subr.mxu0 0.0
    %403 = vmatpush1.msra.mxu0 0.0
    %404 = vmatprep.subr.mxu0 0.0
    %405 = vmatpush1.msra.mxu0 0.0
    %406 = vmatprep.subr.mxu0 0.0
    %407 = vmatpush1.msra.mxu0 0.0
    %408 = vmatprep.subr.mxu0 0.0
    %409 = vmatpush1.msra.mxu0 0.0
    %410 = vmatprep.subr.mxu0 0.0
    %411 = vmatpush1.msra.mxu0 0.0
    %412 = vmatprep.mubr.f32.mxu0 0.0
    %413 = vmatmul.mubr.f32.gmra.mrb[0].mxu0 %v346
    %v414 = vpop.f32.mrb[0].mxu0
    %v415 = vadd.f32 0.0, %v414
    %v416 = vpop.f32.mrb[0].mxu0
    %417 = vdwg.mxu0
    %v419 = vsel %vm137, %v315, 0
    %421 = vmatprep.subr.mxu0 0.0
    %422 = vmatpush1.msra.mxu0 %v341
    %423 = vmatprep.subr.mxu0 0.0
    %424 = vmatpush1.msra.mxu0 %v342
    %425 = vmatprep.subr.mxu0 0.0
    %426 = vmatpush1.msra.mxu0 0.0
    %427 = vmatprep.subr.mxu0 0.0
    %428 = vmatpush1.msra.mxu0 0.0
    %429 = vmatprep.subr.mxu0 0.0
    %430 = vmatpush1.msra.mxu0 0.0
    %431 = vmatprep.subr.mxu0 0.0
    %432 = vmatpush1.msra.mxu0 0.0
    %433 = vmatprep.subr.mxu0 0.0
    %434 = vmatpush1.msra.mxu0 0.0
    %435 = vmatprep.subr.mxu0 0.0
    %436 = vmatpush1.msra.mxu0 0.0
    %437 = vmatprep.subr.mxu0 0.0
    %438 = vmatpush1.msra.mxu0 0.0
    %439 = vmatprep.subr.mxu0 0.0
    %440 = vmatpush1.msra.mxu0 0.0
    %441 = vmatprep.subr.mxu0 0.0
    %442 = vmatpush1.msra.mxu0 0.0
    %443 = vmatprep.subr.mxu0 0.0
    %444 = vmatpush1.msra.mxu0 0.0
    %445 = vmatprep.subr.mxu0 0.0
    %446 = vmatpush1.msra.mxu0 0.0
    %447 = vmatprep.subr.mxu0 0.0
    %448 = vmatpush1.msra.mxu0 0.0
    %449 = vmatprep.subr.mxu0 0.0
    %450 = vmatpush1.msra.mxu0 0.0
    %451 = vmatprep.subr.mxu0 0.0
    %452 = vmatpush1.msra.mxu0 0.0
    %453 = vmatprep.subr.mxu0 0.0
    %454 = vmatpush1.msra.mxu0 0.0
    %455 = vmatprep.subr.mxu0 0.0
    %456 = vmatpush1.msra.mxu0 0.0
    %457 = vmatprep.subr.mxu0 0.0
    %458 = vmatpush1.msra.mxu0 0.0
    %459 = vmatprep.subr.mxu0 0.0
    %460 = vmatpush1.msra.mxu0 0.0
    %461 = vmatprep.subr.mxu0 0.0
    %462 = vmatpush1.msra.mxu0 0.0
    %463 = vmatprep.subr.mxu0 0.0
    %464 = vmatpush1.msra.mxu0 0.0
    %465 = vmatprep.subr.mxu0 0.0
    %466 = vmatpush1.msra.mxu0 0.0
    %467 = vmatprep.subr.mxu0 0.0
    %468 = vmatpush1.msra.mxu0 0.0
    %469 = vmatprep.subr.mxu0 0.0
    %470 = vmatpush1.msra.mxu0 0.0
    %471 = vmatprep.subr.mxu0 0.0
    %472 = vmatpush1.msra.mxu0 0.0
    %473 = vmatprep.subr.mxu0 0.0
    %474 = vmatpush1.msra.mxu0 0.0
    %475 = vmatprep.subr.mxu0 0.0
    %476 = vmatpush1.msra.mxu0 0.0
    %477 = vmatprep.subr.mxu0 0.0
    %478 = vmatpush1.msra.mxu0 0.0
    %479 = vmatprep.subr.mxu0 0.0
    %480 = vmatpush1.msra.mxu0 0.0
    %481 = vmatprep.subr.mxu0 0.0
    %482 = vmatpush1.msra.mxu0 0.0
    %483 = vmatprep.subr.mxu0 0.0
    %484 = vmatpush1.msra.mxu0 0.0
    %485 = vmatprep.mubr.f32.mxu0 0.0
    %486 = vmatmul.mubr.f32.gmra.mrb[0].mxu0 %v419
    %v487 = vpop.f32.mrb[0].mxu0
    %v488 = vadd.f32 %v415, %v487
    %v489 = vpop.f32.mrb[0].mxu0
    %490 = vdwg.mxu0
    %v491 = vld [vmem:[%s6] sm:$0xff]
    %v492 = vld [vmem:[%s6 + $0x8] sm:$0xff]
    %v493 = vsel %vm137, %v338, 0
    %495 = vmatprep.subr.mxu0 0.0
    %496 = vmatpush1.msra.mxu0 %v491
    %497 = vmatprep.subr.mxu0 0.0
    %498 = vmatpush1.msra.mxu0 %v492
    %499 = vmatprep.subr.mxu0 0.0
    %500 = vmatpush1.msra.mxu0 0.0
    %501 = vmatprep.subr.mxu0 0.0
    %502 = vmatpush1.msra.mxu0 0.0
    %503 = vmatprep.subr.mxu0 0.0
    %504 = vmatpush1.msra.mxu0 0.0
    %505 = vmatprep.subr.mxu0 0.0
    %506 = vmatpush1.msra.mxu0 0.0
    %507 = vmatprep.subr.mxu0 0.0
    %508 = vmatpush1.msra.mxu0 0.0
    %509 = vmatprep.subr.mxu0 0.0
    %510 = vmatpush1.msra.mxu0 0.0
    %511 = vmatprep.subr.mxu0 0.0
    %512 = vmatpush1.msra.mxu0 0.0
    %513 = vmatprep.subr.mxu0 0.0
    %514 = vmatpush1.msra.mxu0 0.0
    %515 = vmatprep.subr.mxu0 0.0
    %516 = vmatpush1.msra.mxu0 0.0
    %517 = vmatprep.subr.mxu0 0.0
    %518 = vmatpush1.msra.mxu0 0.0
    %519 = vmatprep.subr.mxu0 0.0
    %520 = vmatpush1.msra.mxu0 0.0
    %521 = vmatprep.subr.mxu0 0.0
    %522 = vmatpush1.msra.mxu0 0.0
    %523 = vmatprep.subr.mxu0 0.0
    %524 = vmatpush1.msra.mxu0 0.0
    %525 = vmatprep.subr.mxu0 0.0
    %526 = vmatpush1.msra.mxu0 0.0
    %527 = vmatprep.subr.mxu0 0.0
    %528 = vmatpush1.msra.mxu0 0.0
    %529 = vmatprep.subr.mxu0 0.0
    %530 = vmatpush1.msra.mxu0 0.0
    %531 = vmatprep.subr.mxu0 0.0
    %532 = vmatpush1.msra.mxu0 0.0
    %533 = vmatprep.subr.mxu0 0.0
    %534 = vmatpush1.msra.mxu0 0.0
    %535 = vmatprep.subr.mxu0 0.0
    %536 = vmatpush1.msra.mxu0 0.0
    %537 = vmatprep.subr.mxu0 0.0
    %538 = vmatpush1.msra.mxu0 0.0
    %539 = vmatprep.subr.mxu0 0.0
    %540 = vmatpush1.msra.mxu0 0.0
    %541 = vmatprep.subr.mxu0 0.0
    %542 = vmatpush1.msra.mxu0 0.0
    %543 = vmatprep.subr.mxu0 0.0
    %544 = vmatpush1.msra.mxu0 0.0
    %545 = vmatprep.subr.mxu0 0.0
    %546 = vmatpush1.msra.mxu0 0.0
    %547 = vmatprep.subr.mxu0 0.0
    %548 = vmatpush1.msra.mxu0 0.0
    %549 = vmatprep.subr.mxu0 0.0
    %550 = vmatpush1.msra.mxu0 0.0
    %551 = vmatprep.subr.mxu0 0.0
    %552 = vmatpush1.msra.mxu0 0.0
    %553 = vmatprep.subr.mxu0 0.0
    %554 = vmatpush1.msra.mxu0 0.0
    %555 = vmatprep.subr.mxu0 0.0
    %556 = vmatpush1.msra.mxu0 0.0
    %557 = vmatprep.subr.mxu0 0.0
    %558 = vmatpush1.msra.mxu0 0.0
    %559 = vmatprep.mubr.f32.mxu0 0.0
    %560 = vmatmul.mubr.f32.gmra.mrb[0].mxu0 %v493
    %v561 = vpop.f32.mrb[0].mxu0
    %v562 = vadd.f32 0.0, %v561
    %v563 = vpop.f32.mrb[0].mxu0
    %564 = vdwg.mxu0
    %v565 = vadd.f32 %v488, %v562
    %v566 = vld [vmem:[%s7] sm:$0xff]
    %v567 = vld [vmem:[%s7 + $0x8] sm:$0xff]
    %v569 = vsel %vm137, %v340, 0
    %571 = vmatprep.subr.mxu0 0.0
    %572 = vmatpush1.msra.mxu0 %v566
    %573 = vmatprep.subr.mxu0 0.0
    %574 = vmatpush1.msra.mxu0 %v567
    %575 = vmatprep.subr.mxu0 0.0
    %576 = vmatpush1.msra.mxu0 0.0
    %577 = vmatprep.subr.mxu0 0.0
    %578 = vmatpush1.msra.mxu0 0.0
    %579 = vmatprep.subr.mxu0 0.0
    %580 = vmatpush1.msra.mxu0 0.0
    %581 = vmatprep.subr.mxu0 0.0
    %582 = vmatpush1.msra.mxu0 0.0
    %583 = vmatprep.subr.mxu0 0.0
    %584 = vmatpush1.msra.mxu0 0.0
    %585 = vmatprep.subr.mxu0 0.0
    %586 = vmatpush1.msra.mxu0 0.0
    %587 = vmatprep.subr.mxu0 0.0
    %588 = vmatpush1.msra.mxu0 0.0
    %589 = vmatprep.subr.mxu0 0.0
    %590 = vmatpush1.msra.mxu0 0.0
    %591 = vmatprep.subr.mxu0 0.0
    %592 = vmatpush1.msra.mxu0 0.0
    %593 = vmatprep.subr.mxu0 0.0
    %594 = vmatpush1.msra.mxu0 0.0
    %595 = vmatprep.subr.mxu0 0.0
    %596 = vmatpush1.msra.mxu0 0.0
    %597 = vmatprep.subr.mxu0 0.0
    %598 = vmatpush1.msra.mxu0 0.0
    %599 = vmatprep.subr.mxu0 0.0
    %600 = vmatpush1.msra.mxu0 0.0
    %601 = vmatprep.subr.mxu0 0.0
    %602 = vmatpush1.msra.mxu0 0.0
    %603 = vmatprep.subr.mxu0 0.0
    %604 = vmatpush1.msra.mxu0 0.0
    %605 = vmatprep.subr.mxu0 0.0
    %606 = vmatpush1.msra.mxu0 0.0
    %607 = vmatprep.subr.mxu0 0.0
    %608 = vmatpush1.msra.mxu0 0.0
    %609 = vmatprep.subr.mxu0 0.0
    %610 = vmatpush1.msra.mxu0 0.0
    %611 = vmatprep.subr.mxu0 0.0
    %612 = vmatpush1.msra.mxu0 0.0
    %613 = vmatprep.subr.mxu0 0.0
    %614 = vmatpush1.msra.mxu0 0.0
    %615 = vmatprep.subr.mxu0 0.0
    %616 = vmatpush1.msra.mxu0 0.0
    %617 = vmatprep.subr.mxu0 0.0
    %618 = vmatpush1.msra.mxu0 0.0
    %619 = vmatprep.subr.mxu0 0.0
    %620 = vmatpush1.msra.mxu0 0.0
    %621 = vmatprep.subr.mxu0 0.0
    %622 = vmatpush1.msra.mxu0 0.0
    %623 = vmatprep.subr.mxu0 0.0
    %624 = vmatpush1.msra.mxu0 0.0
    %625 = vmatprep.subr.mxu0 0.0
    %626 = vmatpush1.msra.mxu0 0.0
    %627 = vmatprep.subr.mxu0 0.0
    %628 = vmatpush1.msra.mxu0 0.0
    %629 = vmatprep.subr.mxu0 0.0
    %630 = vmatpush1.msra.mxu0 0.0
    %631 = vmatprep.subr.mxu0 0.0
    %632 = vmatpush1.msra.mxu0 0.0
    %633 = vmatprep.subr.mxu0 0.0
    %634 = vmatpush1.msra.mxu0 0.0
    %635 = vmatprep.mubr.f32.mxu0 0.0
    %636 = vmatmul.mubr.f32.gmra.mrb[0].mxu0 %v569
    %v637 = vpop.f32.mrb[0].mxu0
    %v638 = vadd.f32 0.0, %v637
    %v639 = vpop.f32.mrb[0].mxu0
    %640 = vdwg.mxu0
    %v641 = vadd.f32 %v565, %v638
    %v642 = vld [vmem:[%s8] sm:$0x1]
    %v644 = vlaneseq
    %v645 = vshrl.u32 %v644, 7
    %v646 = vsub.s32 0, %v645
    %v647 = vrot.slane %v642, %v646
    %v649 = vadd.f32 %v641, %v647
    %v650 = vmax.f32 %v649, 0.0
    %v651 = vld [vmem:[%s9] sm:$0xff]
    %v652 = vld [vmem:[%s9 + $0x8] sm:$0xff]
    %v653 = vld [vmem:[%s9 + $0x10] sm:$0xff]
    %v654 = vld [vmem:[%s9 + $0x18] sm:$0xff]
    %v655 = vld [vmem:[%s10] sm:$0x1]
    %v657 = vlaneseq
    %v658 = vshrl.u32 %v657, 7
    %v659 = vsub.s32 0, %v658
    %v660 = vrot.slane %v655, %v659
    %vm662 = vcmask 261120
    %v664 = vsel %vm662, %v650, 0
    %666 = vmatprep.subr.mxu0 0.0
    %667 = vmatpush1.msra.mxu0 %v651
    %668 = vmatprep.subr.mxu0 0.0
    %669 = vmatpush1.msra.mxu0 %v652
    %670 = vmatprep.subr.mxu0 0.0
    %671 = vmatpush1.msra.mxu0 %v653
    %672 = vmatprep.subr.mxu0 0.0
    %673 = vmatpush1.msra.mxu0 %v654
    %674 = vmatprep.subr.mxu0 0.0
    %675 = vmatpush1.msra.mxu0 0.0
    %676 = vmatprep.subr.mxu0 0.0
    %677 = vmatpush1.msra.mxu0 0.0
    %678 = vmatprep.subr.mxu0 0.0
    %679 = vmatpush1.msra.mxu0 0.0
    %680 = vmatprep.subr.mxu0 0.0
    %681 = vmatpush1.msra.mxu0 0.0
    %682 = vmatprep.subr.mxu0 0.0
    %683 = vmatpush1.msra.mxu0 0.0
    %684 = vmatprep.subr.mxu0 0.0
    %685 = vmatpush1.msra.mxu0 0.0
    %686 = vmatprep.subr.mxu0 0.0
    %687 = vmatpush1.msra.mxu0 0.0
    %688 = vmatprep.subr.mxu0 0.0
    %689 = vmatpush1.msra.mxu0 0.0
    %690 = vmatprep.subr.mxu0 0.0
    %691 = vmatpush1.msra.mxu0 0.0
    %692 = vmatprep.subr.mxu0 0.0
    %693 = vmatpush1.msra.mxu0 0.0
    %694 = vmatprep.subr.mxu0 0.0
    %695 = vmatpush1.msra.mxu0 0.0
    %696 = vmatprep.subr.mxu0 0.0
    %697 = vmatpush1.msra.mxu0 0.0
    %698 = vmatprep.subr.mxu0 0.0
    %699 = vmatpush1.msra.mxu0 0.0
    %700 = vmatprep.subr.mxu0 0.0
    %701 = vmatpush1.msra.mxu0 0.0
    %702 = vmatprep.subr.mxu0 0.0
    %703 = vmatpush1.msra.mxu0 0.0
    %704 = vmatprep.subr.mxu0 0.0
    %705 = vmatpush1.msra.mxu0 0.0
    %706 = vmatprep.subr.mxu0 0.0
    %707 = vmatpush1.msra.mxu0 0.0
    %708 = vmatprep.subr.mxu0 0.0
    %709 = vmatpush1.msra.mxu0 0.0
    %710 = vmatprep.subr.mxu0 0.0
    %711 = vmatpush1.msra.mxu0 0.0
    %712 = vmatprep.subr.mxu0 0.0
    %713 = vmatpush1.msra.mxu0 0.0
    %714 = vmatprep.subr.mxu0 0.0
    %715 = vmatpush1.msra.mxu0 0.0
    %716 = vmatprep.subr.mxu0 0.0
    %717 = vmatpush1.msra.mxu0 0.0
    %718 = vmatprep.subr.mxu0 0.0
    %719 = vmatpush1.msra.mxu0 0.0
    %720 = vmatprep.subr.mxu0 0.0
    %721 = vmatpush1.msra.mxu0 0.0
    %722 = vmatprep.subr.mxu0 0.0
    %723 = vmatpush1.msra.mxu0 0.0
    %724 = vmatprep.subr.mxu0 0.0
    %725 = vmatpush1.msra.mxu0 0.0
    %726 = vmatprep.subr.mxu0 0.0
    %727 = vmatpush1.msra.mxu0 0.0
    %728 = vmatprep.subr.mxu0 0.0
    %729 = vmatpush1.msra.mxu0 0.0
    %730 = vmatprep.mubr.f32.mxu0 0.0
    %731 = vmatmul.mubr.f32.gmra.mrb[0].mxu0 %v664
    %v732 = vpop.f32.mrb[0].mxu0
    %v733 = vadd.f32 %v660, %v732
    %v734 = vpop.f32.mrb[0].mxu0
    %735 = vdwg.mxu0
    %v736 = vmax.f32 %v733, 0.0
    %v737 = vld [vmem:[%s11] sm:$0xff]
    %v738 = vld [vmem:[%s11 + $0x8] sm:$0xff]
    %v739 = vld [vmem:[#allocation2] sm:$0x1]
    %v741 = vlaneseq
    %v742 = vshrl.u32 %v741, 7
    %v743 = vsub.s32 0, %v742
    %v744 = vrot.slane %v739, %v743
    %v747 = vsel %vm137, %v736, 0
    %749 = vmatprep.subr.mxu0 0.0
    %750 = vmatpush1.msra.mxu0 %v737
    %751 = vmatprep.subr.mxu0 0.0
    %752 = vmatpush1.msra.mxu0 %v738
    %753 = vmatprep.subr.mxu0 0.0
    %754 = vmatpush1.msra.mxu0 0.0
    %755 = vmatprep.subr.mxu0 0.0
    %756 = vmatpush1.msra.mxu0 0.0
    %757 = vmatprep.subr.mxu0 0.0
    %758 = vmatpush1.msra.mxu0 0.0
    %759 = vmatprep.subr.mxu0 0.0
    %760 = vmatpush1.msra.mxu0 0.0
    %761 = vmatprep.subr.mxu0 0.0
    %762 = vmatpush1.msra.mxu0 0.0
    %763 = vmatprep.subr.mxu0 0.0
    %764 = vmatpush1.msra.mxu0 0.0
    %765 = vmatprep.subr.mxu0 0.0
    %766 = vmatpush1.msra.mxu0 0.0
    %767 = vmatprep.subr.mxu0 0.0
    %768 = vmatpush1.msra.mxu0 0.0
    %769 = vmatprep.subr.mxu0 0.0
    %770 = vmatpush1.msra.mxu0 0.0
    %771 = vmatprep.subr.mxu0 0.0
    %772 = vmatpush1.msra.mxu0 0.0
    %773 = vmatprep.subr.mxu0 0.0
    %774 = vmatpush1.msra.mxu0 0.0
    %775 = vmatprep.subr.mxu0 0.0
    %776 = vmatpush1.msra.mxu0 0.0
    %777 = vmatprep.subr.mxu0 0.0
    %778 = vmatpush1.msra.mxu0 0.0
    %779 = vmatprep.subr.mxu0 0.0
    %780 = vmatpush1.msra.mxu0 0.0
    %781 = vmatprep.subr.mxu0 0.0
    %782 = vmatpush1.msra.mxu0 0.0
    %783 = vmatprep.subr.mxu0 0.0
    %784 = vmatpush1.msra.mxu0 0.0
    %785 = vmatprep.subr.mxu0 0.0
    %786 = vmatpush1.msra.mxu0 0.0
    %787 = vmatprep.subr.mxu0 0.0
    %788 = vmatpush1.msra.mxu0 0.0
    %789 = vmatprep.subr.mxu0 0.0
    %790 = vmatpush1.msra.mxu0 0.0
    %791 = vmatprep.subr.mxu0 0.0
    %792 = vmatpush1.msra.mxu0 0.0
    %793 = vmatprep.subr.mxu0 0.0
    %794 = vmatpush1.msra.mxu0 0.0
    %795 = vmatprep.subr.mxu0 0.0
    %796 = vmatpush1.msra.mxu0 0.0
    %797 = vmatprep.subr.mxu0 0.0
    %798 = vmatpush1.msra.mxu0 0.0
    %799 = vmatprep.subr.mxu0 0.0
    %800 = vmatpush1.msra.mxu0 0.0
    %801 = vmatprep.subr.mxu0 0.0
    %802 = vmatpush1.msra.mxu0 0.0
    %803 = vmatprep.subr.mxu0 0.0
    %804 = vmatpush1.msra.mxu0 0.0
    %805 = vmatprep.subr.mxu0 0.0
    %806 = vmatpush1.msra.mxu0 0.0
    %807 = vmatprep.subr.mxu0 0.0
    %808 = vmatpush1.msra.mxu0 0.0
    %809 = vmatprep.subr.mxu0 0.0
    %810 = vmatpush1.msra.mxu0 0.0
    %811 = vmatprep.subr.mxu0 0.0
    %812 = vmatpush1.msra.mxu0 0.0
    %813 = vmatprep.mubr.f32.mxu0 0.0
    %814 = vmatmul.mubr.f32.gmra.mrb[0].mxu0 %v747
    %v815 = vpop.f32.mrb[0].mxu0
    %v816 = vadd.f32 %v744, %v815
    %v817 = vpop.f32.mrb[0].mxu0
    %818 = vdwg.mxu0
    %v819 = vsub.f32 0.0, %v816
    %v820 = vmul.f32 %v819, 1.442695
    %v821 = vpow.pop %v820
    %v822 = vadd.f32 %v821, 1.0
    %v823 = vrcp.pop %v822
    %v824 = vmul.f32 1.0, %v823
    %825 = vst.msk [vmem:[%s13] sm:$0xff] %vm194, %v824
    %826 = vst.msk [vmem:[#allocation8] sm:$0xff] %vm137, %v338
    // Predicated region
    $region62: #{tpu_custom_call.1} parent=1 // pred_check
      _
    $region63: #{tpu_custom_call.1} parent=1 // pred_check_branch
      %828 = sbr.rel (0) target = $region65
    $region64: #{tpu_custom_call.1} parent=1 // pred_region
      _
    $region65: #{tpu_custom_call.1} parent=1 // pred_fallthru
      _
    // Predicated region
    $region66: #{tpu_custom_call.1} parent=1 // pred_check
      _
    $region67: #{tpu_custom_call.1} parent=1 // pred_check_branch
      %830 = sbr.rel (0) target = $region69
    $region68: #{tpu_custom_call.1} parent=1 // pred_region
      %s832 = ssub.s32 128, 128
      %833 = vsyncadd [#allocation5], %s832
      %s835 = sshll.u32 [#allocation8], 4
      %s836 = int_to_ptr.vmem [resolvable:$true] %s835
      %838 = dma.vmem_to_hbm [thread:$0]  %s836, 128, %s14, [#allocation5]
    $region69: #{tpu_custom_call.1} parent=1 // pred_fallthru
      _
    // Predicated region
    $region70: #{tpu_custom_call.1} parent=1 // pred_check
      _
    $region71: #{tpu_custom_call.1} parent=1 // pred_check_branch
      %840 = sbr.rel (0) target = $region73
    $region72: #{tpu_custom_call.1} parent=1 // pred_region
      _
    $region73: #{tpu_custom_call.1} parent=1 // pred_fallthru
      _
    // Predicated region
    $region74: #{tpu_custom_call.1} parent=1 // pred_check
      _
    $region75: #{tpu_custom_call.1} parent=1 // pred_check_branch
      %842 = sbr.rel (0) target = $region77
    $region76: #{tpu_custom_call.1} parent=1 // pred_region
      %843 = dma.done [#allocation5], 128
    $region77: #{tpu_custom_call.1} parent=1 // pred_fallthru
      _
    %844 = vsyncpa [#allocation4], 1
    %845 = vsyncpa [#allocation7], 1
    %846 = vsyncpa [#allocation5], 1

</llo_original>
